<compile_context>
chip_gen: v7x
topology: tpu7x:2x2x1
jax: 0.10.0
libtpu: 0.0.40
codegen_flags: <defaults>
</compile_context>

<pallas_src>
import jax
import jax.numpy as jnp
from jax import lax
from jax.experimental import pallas as pl
from jax.experimental.pallas import tpu as pltpu


NBUF = 8  # row-gather DMAs kept in flight per grid step (power of two, >= 1)


def _embed_gather_kernel(idx_ref, tbl_ref, out_ref, sems):
    """Gather one (tok_blk, W) block of embedding rows via HBM->VMEM DMAs.

    idx_ref : (n_pad,) int32   SMEM (scalar prefetch)  flat token ids
    tbl_ref : (V, W) uint32    HBM (memory_space=ANY)  embedding table rows
    out_ref : (tok_blk, W)     VMEM                    output block
    sems    : (NBUF,)          DMA semaphores
    """
    tok_blk = out_ref.shape[0]
    base = pl.program_id(0) * tok_blk

    def start(t, slot, row):
        pltpu.make_async_copy(
            tbl_ref.at[pl.ds(row, 1), :],
            out_ref.at[pl.ds(t, 1), :],
            sems.at[slot],
        ).start()

    def wait(t, slot):
        # Only shapes matter for the wait descriptor; dst row pins the
        # dependency on out_ref before the pipeline writes the block back.
        pltpu.make_async_copy(
            tbl_ref.at[pl.ds(0, 1), :],
            out_ref.at[pl.ds(t, 1), :],
            sems.at[slot],
        ).wait()

    # Prime NBUF copies (static unrolled; tok_blk >= NBUF by construction).
    for t in range(NBUF):
        start(t, t, idx_ref[base + t])

    # Steady state: retire the copy holding this slot, then reuse the slot.
    @pl.loop(NBUF, tok_blk)
    def _steady(t):
        slot = lax.rem(t, NBUF)
        row = idx_ref[base + t]          # scalar read before the wait
        wait(t - NBUF, slot)
        start(t, slot, row)

    # Drain the last NBUF copies (static unrolled).
    for i in range(NBUF):
        t = tok_blk - NBUF + i
        wait(t, t % NBUF)


def _vmem_capacity_bytes():
    try:
        cap = getattr(pltpu.get_tpu_info(), "vmem_capacity_bytes", None)
        if cap:
            return int(cap)
    except Exception:
        pass
    return 64 * 1024 * 1024  # conservative default: v7x per-TensorCore VMEM


def _rows_to_u32(x):
    """Byte-view a (R, C) array as (R, C*itemsize//4) uint32 (row-preserving)."""
    r, c = x.shape
    itemsize = jnp.dtype(x.dtype).itemsize
    if itemsize == 4:
        return lax.bitcast_convert_type(x, jnp.uint32)
    per = 4 // itemsize
    return lax.bitcast_convert_type(x.reshape(r, c // per, per), jnp.uint32)


def _u32_to_rows(x_u32, dtype, c):
    r = x_u32.shape[0]
    return lax.bitcast_convert_type(x_u32, dtype).reshape(r, c)


def hlm_encoder_input(input_ids, mask, emb_table, *, tok_blk=512):
    """Pallas equivalent of HLmEncoderInput.forward(input_ids, mask).

    input_ids: (B, S) integer token ids; mask: (B, S) bool (unused, as in the
    PyTorch module); emb_table: (vocab_size, hidden_size).
    Returns (B, S, hidden_size) in emb_table.dtype.  Token ids must be in
    [0, vocab_size) (same contract as nn.Embedding).
    """
    del mask  # HLmEncoderInput ignores the mask for the embedding lookup.

    B, S = input_ids.shape
    V, H = emb_table.shape
    dtype = emb_table.dtype
    itemsize = jnp.dtype(dtype).itemsize
    n = B * S
    row_bytes = H * itemsize

    # Small-shape / unsupported-layout fast path: plain XLA gather.
    if n < max(tok_blk, NBUF) or itemsize not in (1, 2, 4) or row_bytes % 4 != 0:
        out = jnp.take(emb_table, input_ids.reshape(-1).astype(jnp.int32), axis=0)
        return out.reshape(B, S, H)

    # --- generation-aware block sizing -------------------------------------
    vmem_cap = _vmem_capacity_bytes()
    # Keep the double-buffered (tok_blk, row) output block under ~1/4 of VMEM.
    while tok_blk > 64 and 2 * tok_blk * row_bytes > vmem_cap // 4:
        tok_blk //= 2
    # Give the v7x megacore at least two blocks to shard when possible.
    while n < 2 * tok_blk and tok_blk >= 2 * NBUF:
        tok_blk //= 2
    tok_blk = max(NBUF, (tok_blk // 8) * 8)  # sublane-aligned, >= NBUF

    n_blocks = pl.cdiv(n, tok_blk)
    n_pad = n_blocks * tok_blk

    idx = input_ids.reshape(-1).astype(jnp.int32)
    if n_pad != n:
        idx = jnp.pad(idx, (0, n_pad - n))   # padded tokens gather row 0; sliced off

    tbl_u32 = _rows_to_u32(emb_table)        # (V, W) uint32, W = row_bytes // 4
    W = tbl_u32.shape[1]

    # Only VMEM consumer: the double-buffered output block (+ slack).
    need = 2 * tok_blk * W * 4 + (1 << 20)
    vmem_limit = int(min(max(2 * need, 16 << 20), int(0.8 * vmem_cap)))

    out_u32 = pl.pallas_call(
        _embed_gather_kernel,
        out_shape=jax.ShapeDtypeStruct((n_pad, W), jnp.uint32),
        grid_spec=pltpu.PrefetchScalarGridSpec(
            num_scalar_prefetch=1,                            # flat ids -> SMEM
            grid=(n_blocks,),
            in_specs=[pl.BlockSpec(memory_space=pl.ANY)],     # table stays in HBM
            out_specs=pl.BlockSpec((tok_blk, W), lambda t, _idx: (t, 0)),
            scratch_shapes=[pltpu.SemaphoreType.DMA((NBUF,))],
        ),
        compiler_params=pltpu.CompilerParams(
            dimension_semantics=("parallel",),
            vmem_limit_bytes=vmem_limit,
        ),
    )(idx, tbl_u32)

    if n_pad != n:
        out_u32 = out_u32[:n]
    return _u32_to_rows(out_u32, dtype, H).reshape(B, S, H)


if __name__ == "__main__":
    key = jax.random.PRNGKey(0)
    k_emb, k_ids, k_mask, k_emb2, k_ids2, k_emb3, k_ids3 = jax.random.split(key, 7)

    # --- config A: small shapes consistent with the module (hidden=32, seq=8) ---
    V1, H1, B1, S1 = 16, 32, 2, 8
    emb1 = jax.random.normal(k_emb, (V1, H1), dtype=jnp.float32)
    ids1 = jax.random.randint(k_ids, (B1, S1), 0, V1, dtype=jnp.int32)
    mask1 = jax.random.bernoulli(k_mask, 0.5, (B1, S1))
    ref1 = emb1[ids1]

    # A1: Pallas DMA-gather path forced at the small shape (tok_blk=8 -> 2 blocks).
    out1 = jax.block_until_ready(hlm_encoder_input(ids1, mask1, emb1, tok_blk=8))
    assert out1.shape == (B1, S1, H1)
    assert jnp.array_equal(out1, ref1)

    # A2: default tok_blk -> small-shape fallback path (plain XLA gather).
    out1b = jax.block_until_ready(hlm_encoder_input(ids1, mask1, emb1))
    assert jnp.array_equal(out1b, ref1)

    # --- config B: bf16 table, several token blocks, vocab not 8-aligned ---
    V2, H2, B2, S2 = 1000, 256, 4, 256
    emb2 = jax.random.normal(k_emb2, (V2, H2), dtype=jnp.float32).astype(jnp.bfloat16)
    ids2 = jax.random.randint(k_ids2, (B2, S2), 0, V2, dtype=jnp.int32)
    mask2 = jnp.ones((B2, S2), dtype=jnp.bool_)
    out2 = jax.block_until_ready(hlm_encoder_input(ids2, mask2, emb2, tok_blk=256))
    assert out2.shape == (B2, S2, H2)
    assert jnp.array_equal(out2, emb2[ids2])

    # --- config C: f32, hidden not 128-aligned, token count not a block multiple ---
    V3, H3, B3, S3 = 97, 96, 3, 50
    emb3 = jax.random.normal(k_emb3, (V3, H3), dtype=jnp.float32)
    ids3 = jax.random.randint(k_ids3, (B3, S3), 0, V3, dtype=jnp.int32)
    mask3 = jnp.ones((B3, S3), dtype=jnp.bool_)
    out3 = jax.block_until_ready(hlm_encoder_input(ids3, mask3, emb3, tok_blk=64))
    assert out3.shape == (B3, S3, H3)
    assert jnp.array_equal(out3, emb3[ids3])

    print("KERNEL_OK")
</pallas_src>

<mosaic_0001>
module attributes {stable_mosaic.version = 11 : i64} {
  func.func @_embed_gather_kernel(%arg0: i32, %arg1: memref<16xi32, #tpu.memory_space<smem>>, %arg2: memref<16x32xi32, #tpu.memory_space<any>>, %arg3: memref<8x32xi32, #tpu.memory_space<vmem>>, %arg4: memref<8x!tpu.dma_semaphore, #tpu.memory_space<semaphore_mem>>) attributes {dimension_semantics = [#tpu.dimension_semantics<parallel>], iteration_bounds = array<i64: 2>, scalar_prefetch = 1 : i64, scratch_operands = 1 : i64, tpu.core_type = #tpu.core_type<tc>, window_params = [{}, {transform_indices = @transform_1, window_bounds = array<i64: 8, 32>}]} {
    %c8_i32 = arith.constant 8 : i32
    %0 = arith.muli %arg0, %c8_i32 : i32
    %c0_i32 = arith.constant 0 : i32
    %1 = arith.addi %0, %c0_i32 : i32
    %2 = arith.index_cast %1 : i32 to index
    %3 = memref.load %arg1[%2] : memref<16xi32, #tpu.memory_space<smem>>
    %c0_i32_0 = arith.constant 0 : i32
    %c0_i32_1 = arith.constant 0 : i32
    %4 = tpu.memref_slice %arg2[%3, %c0_i32_1] : memref<16x32xi32, #tpu.memory_space<any>> -> memref<1x32xi32, #tpu.memory_space<any>>
    %c0_i32_2 = arith.constant 0 : i32
    %c0_i32_3 = arith.constant 0 : i32
    %5 = tpu.memref_slice %arg3[%c0_i32_2, %c0_i32_3] : memref<8x32xi32, #tpu.memory_space<vmem>> -> memref<1x32xi32, #tpu.memory_space<vmem>>
    %6 = tpu.memref_slice %arg4[%c0_i32_0] : memref<8x!tpu.dma_semaphore, #tpu.memory_space<semaphore_mem>> -> memref<1x!tpu.dma_semaphore, #tpu.memory_space<semaphore_mem>>
    %7 = tpu.memref_squeeze %6 : memref<1x!tpu.dma_semaphore, #tpu.memory_space<semaphore_mem>> -> memref<!tpu.dma_semaphore, #tpu.memory_space<semaphore_mem>>
    tpu.enqueue_dma source(%4 : memref<1x32xi32, #tpu.memory_space<any>>) target(%5 : memref<1x32xi32, #tpu.memory_space<vmem>>) target_semaphore(%7 : memref<!tpu.dma_semaphore, #tpu.memory_space<semaphore_mem>>)
    %c1_i32 = arith.constant 1 : i32
    %8 = arith.addi %0, %c1_i32 : i32
    %9 = arith.index_cast %8 : i32 to index
    %10 = memref.load %arg1[%9] : memref<16xi32, #tpu.memory_space<smem>>
    %c1_i32_4 = arith.constant 1 : i32
    %c0_i32_5 = arith.constant 0 : i32
    %11 = tpu.memref_slice %arg2[%10, %c0_i32_5] : memref<16x32xi32, #tpu.memory_space<any>> -> memref<1x32xi32, #tpu.memory_space<any>>
    %c1_i32_6 = arith.constant 1 : i32
    %c0_i32_7 = arith.constant 0 : i32
    %12 = tpu.memref_slice %arg3[%c1_i32_6, %c0_i32_7] : memref<8x32xi32, #tpu.memory_space<vmem>> -> memref<1x32xi32, #tpu.memory_space<vmem>>
    %13 = tpu.memref_slice %arg4[%c1_i32_4] : memref<8x!tpu.dma_semaphore, #tpu.memory_space<semaphore_mem>> -> memref<1x!tpu.dma_semaphore, #tpu.memory_space<semaphore_mem>>
    %14 = tpu.memref_squeeze %13 : memref<1x!tpu.dma_semaphore, #tpu.memory_space<semaphore_mem>> -> memref<!tpu.dma_semaphore, #tpu.memory_space<semaphore_mem>>
    tpu.enqueue_dma source(%11 : memref<1x32xi32, #tpu.memory_space<any>>) target(%12 : memref<1x32xi32, #tpu.memory_space<vmem>>) target_semaphore(%14 : memref<!tpu.dma_semaphore, #tpu.memory_space<semaphore_mem>>)
    %c2_i32 = arith.constant 2 : i32
    %15 = arith.addi %0, %c2_i32 : i32
    %16 = arith.index_cast %15 : i32 to index
    %17 = memref.load %arg1[%16] : memref<16xi32, #tpu.memory_space<smem>>
    %c2_i32_8 = arith.constant 2 : i32
    %c0_i32_9 = arith.constant 0 : i32
    %18 = tpu.memref_slice %arg2[%17, %c0_i32_9] : memref<16x32xi32, #tpu.memory_space<any>> -> memref<1x32xi32, #tpu.memory_space<any>>
    %c2_i32_10 = arith.constant 2 : i32
    %c0_i32_11 = arith.constant 0 : i32
    %19 = tpu.memref_slice %arg3[%c2_i32_10, %c0_i32_11] : memref<8x32xi32, #tpu.memory_space<vmem>> -> memref<1x32xi32, #tpu.memory_space<vmem>>
    %20 = tpu.memref_slice %arg4[%c2_i32_8] : memref<8x!tpu.dma_semaphore, #tpu.memory_space<semaphore_mem>> -> memref<1x!tpu.dma_semaphore, #tpu.memory_space<semaphore_mem>>
    %21 = tpu.memref_squeeze %20 : memref<1x!tpu.dma_semaphore, #tpu.memory_space<semaphore_mem>> -> memref<!tpu.dma_semaphore, #tpu.memory_space<semaphore_mem>>
    tpu.enqueue_dma source(%18 : memref<1x32xi32, #tpu.memory_space<any>>) target(%19 : memref<1x32xi32, #tpu.memory_space<vmem>>) target_semaphore(%21 : memref<!tpu.dma_semaphore, #tpu.memory_space<semaphore_mem>>)
    %c3_i32 = arith.constant 3 : i32
    %22 = arith.addi %0, %c3_i32 : i32
    %23 = arith.index_cast %22 : i32 to index
    %24 = memref.load %arg1[%23] : memref<16xi32, #tpu.memory_space<smem>>
    %c3_i32_12 = arith.constant 3 : i32
    %c0_i32_13 = arith.constant 0 : i32
    %25 = tpu.memref_slice %arg2[%24, %c0_i32_13] : memref<16x32xi32, #tpu.memory_space<any>> -> memref<1x32xi32, #tpu.memory_space<any>>
    %c3_i32_14 = arith.constant 3 : i32
    %c0_i32_15 = arith.constant 0 : i32
    %26 = tpu.memref_slice %arg3[%c3_i32_14, %c0_i32_15] : memref<8x32xi32, #tpu.memory_space<vmem>> -> memref<1x32xi32, #tpu.memory_space<vmem>>
    %27 = tpu.memref_slice %arg4[%c3_i32_12] : memref<8x!tpu.dma_semaphore, #tpu.memory_space<semaphore_mem>> -> memref<1x!tpu.dma_semaphore, #tpu.memory_space<semaphore_mem>>
    %28 = tpu.memref_squeeze %27 : memref<1x!tpu.dma_semaphore, #tpu.memory_space<semaphore_mem>> -> memref<!tpu.dma_semaphore, #tpu.memory_space<semaphore_mem>>
    tpu.enqueue_dma source(%25 : memref<1x32xi32, #tpu.memory_space<any>>) target(%26 : memref<1x32xi32, #tpu.memory_space<vmem>>) target_semaphore(%28 : memref<!tpu.dma_semaphore, #tpu.memory_space<semaphore_mem>>)
    %c4_i32 = arith.constant 4 : i32
    %29 = arith.addi %0, %c4_i32 : i32
    %30 = arith.index_cast %29 : i32 to index
    %31 = memref.load %arg1[%30] : memref<16xi32, #tpu.memory_space<smem>>
    %c4_i32_16 = arith.constant 4 : i32
    %c0_i32_17 = arith.constant 0 : i32
    %32 = tpu.memref_slice %arg2[%31, %c0_i32_17] : memref<16x32xi32, #tpu.memory_space<any>> -> memref<1x32xi32, #tpu.memory_space<any>>
    %c4_i32_18 = arith.constant 4 : i32
    %c0_i32_19 = arith.constant 0 : i32
    %33 = tpu.memref_slice %arg3[%c4_i32_18, %c0_i32_19] : memref<8x32xi32, #tpu.memory_space<vmem>> -> memref<1x32xi32, #tpu.memory_space<vmem>>
    %34 = tpu.memref_slice %arg4[%c4_i32_16] : memref<8x!tpu.dma_semaphore, #tpu.memory_space<semaphore_mem>> -> memref<1x!tpu.dma_semaphore, #tpu.memory_space<semaphore_mem>>
    %35 = tpu.memref_squeeze %34 : memref<1x!tpu.dma_semaphore, #tpu.memory_space<semaphore_mem>> -> memref<!tpu.dma_semaphore, #tpu.memory_space<semaphore_mem>>
    tpu.enqueue_dma source(%32 : memref<1x32xi32, #tpu.memory_space<any>>) target(%33 : memref<1x32xi32, #tpu.memory_space<vmem>>) target_semaphore(%35 : memref<!tpu.dma_semaphore, #tpu.memory_space<semaphore_mem>>)
    %c5_i32 = arith.constant 5 : i32
    %36 = arith.addi %0, %c5_i32 : i32
    %37 = arith.index_cast %36 : i32 to index
    %38 = memref.load %arg1[%37] : memref<16xi32, #tpu.memory_space<smem>>
    %c5_i32_20 = arith.constant 5 : i32
    %c0_i32_21 = arith.constant 0 : i32
    %39 = tpu.memref_slice %arg2[%38, %c0_i32_21] : memref<16x32xi32, #tpu.memory_space<any>> -> memref<1x32xi32, #tpu.memory_space<any>>
    %c5_i32_22 = arith.constant 5 : i32
    %c0_i32_23 = arith.constant 0 : i32
    %40 = tpu.memref_slice %arg3[%c5_i32_22, %c0_i32_23] : memref<8x32xi32, #tpu.memory_space<vmem>> -> memref<1x32xi32, #tpu.memory_space<vmem>>
    %41 = tpu.memref_slice %arg4[%c5_i32_20] : memref<8x!tpu.dma_semaphore, #tpu.memory_space<semaphore_mem>> -> memref<1x!tpu.dma_semaphore, #tpu.memory_space<semaphore_mem>>
    %42 = tpu.memref_squeeze %41 : memref<1x!tpu.dma_semaphore, #tpu.memory_space<semaphore_mem>> -> memref<!tpu.dma_semaphore, #tpu.memory_space<semaphore_mem>>
    tpu.enqueue_dma source(%39 : memref<1x32xi32, #tpu.memory_space<any>>) target(%40 : memref<1x32xi32, #tpu.memory_space<vmem>>) target_semaphore(%42 : memref<!tpu.dma_semaphore, #tpu.memory_space<semaphore_mem>>)
    %c6_i32 = arith.constant 6 : i32
    %43 = arith.addi %0, %c6_i32 : i32
    %44 = arith.index_cast %43 : i32 to index
    %45 = memref.load %arg1[%44] : memref<16xi32, #tpu.memory_space<smem>>
    %c6_i32_24 = arith.constant 6 : i32
    %c0_i32_25 = arith.constant 0 : i32
    %46 = tpu.memref_slice %arg2[%45, %c0_i32_25] : memref<16x32xi32, #tpu.memory_space<any>> -> memref<1x32xi32, #tpu.memory_space<any>>
    %c6_i32_26 = arith.constant 6 : i32
    %c0_i32_27 = arith.constant 0 : i32
    %47 = tpu.memref_slice %arg3[%c6_i32_26, %c0_i32_27] : memref<8x32xi32, #tpu.memory_space<vmem>> -> memref<1x32xi32, #tpu.memory_space<vmem>>
    %48 = tpu.memref_slice %arg4[%c6_i32_24] : memref<8x!tpu.dma_semaphore, #tpu.memory_space<semaphore_mem>> -> memref<1x!tpu.dma_semaphore, #tpu.memory_space<semaphore_mem>>
    %49 = tpu.memref_squeeze %48 : memref<1x!tpu.dma_semaphore, #tpu.memory_space<semaphore_mem>> -> memref<!tpu.dma_semaphore, #tpu.memory_space<semaphore_mem>>
    tpu.enqueue_dma source(%46 : memref<1x32xi32, #tpu.memory_space<any>>) target(%47 : memref<1x32xi32, #tpu.memory_space<vmem>>) target_semaphore(%49 : memref<!tpu.dma_semaphore, #tpu.memory_space<semaphore_mem>>)
    %c7_i32 = arith.constant 7 : i32
    %50 = arith.addi %0, %c7_i32 : i32
    %51 = arith.index_cast %50 : i32 to index
    %52 = memref.load %arg1[%51] : memref<16xi32, #tpu.memory_space<smem>>
    %c7_i32_28 = arith.constant 7 : i32
    %c0_i32_29 = arith.constant 0 : i32
    %53 = tpu.memref_slice %arg2[%52, %c0_i32_29] : memref<16x32xi32, #tpu.memory_space<any>> -> memref<1x32xi32, #tpu.memory_space<any>>
    %c7_i32_30 = arith.constant 7 : i32
    %c0_i32_31 = arith.constant 0 : i32
    %54 = tpu.memref_slice %arg3[%c7_i32_30, %c0_i32_31] : memref<8x32xi32, #tpu.memory_space<vmem>> -> memref<1x32xi32, #tpu.memory_space<vmem>>
    %55 = tpu.memref_slice %arg4[%c7_i32_28] : memref<8x!tpu.dma_semaphore, #tpu.memory_space<semaphore_mem>> -> memref<1x!tpu.dma_semaphore, #tpu.memory_space<semaphore_mem>>
    %56 = tpu.memref_squeeze %55 : memref<1x!tpu.dma_semaphore, #tpu.memory_space<semaphore_mem>> -> memref<!tpu.dma_semaphore, #tpu.memory_space<semaphore_mem>>
    tpu.enqueue_dma source(%53 : memref<1x32xi32, #tpu.memory_space<any>>) target(%54 : memref<1x32xi32, #tpu.memory_space<vmem>>) target_semaphore(%56 : memref<!tpu.dma_semaphore, #tpu.memory_space<semaphore_mem>>)
    %c0_i32_32 = arith.constant 0 : i32
    %c0_i32_33 = arith.constant 0 : i32
    %57 = arith.addi %c0_i32_32, %c0_i32_33 : i32
    %c1_i32_34 = arith.constant 1 : i32
    scf.for %arg5 = %c0_i32_32 to %57 step %c1_i32_34  : i32 {
      %c1_i32_76 = arith.constant 1 : i32
      %90 = arith.muli %arg5, %c1_i32_76 : i32
      %c8_i32_77 = arith.constant 8 : i32
      %91 = arith.addi %c8_i32_77, %90 : i32
      %c8_i32_78 = arith.constant 8 : i32
      %92 = arith.remsi %91, %c8_i32_78 : i32
      %93 = arith.addi %0, %91 : i32
      %94 = arith.index_cast %93 : i32 to index
      %95 = memref.load %arg1[%94] : memref<16xi32, #tpu.memory_space<smem>>
      %c8_i32_79 = arith.constant 8 : i32
      %96 = arith.subi %91, %c8_i32_79 : i32
      %c0_i32_80 = arith.constant 0 : i32
      %c0_i32_81 = arith.constant 0 : i32
      %97 = tpu.memref_slice %arg2[%c0_i32_80, %c0_i32_81] : memref<16x32xi32, #tpu.memory_space<any>> -> memref<1x32xi32, #tpu.memory_space<any>>
      %c0_i32_82 = arith.constant 0 : i32
      %98 = tpu.memref_slice %arg3[%96, %c0_i32_82] : memref<8x32xi32, #tpu.memory_space<vmem>> -> memref<1x32xi32, #tpu.memory_space<vmem>>
      %99 = tpu.memref_slice %arg4[%92] : memref<8x!tpu.dma_semaphore, #tpu.memory_space<semaphore_mem>> -> memref<1x!tpu.dma_semaphore, #tpu.memory_space<semaphore_mem>>
      %100 = tpu.memref_squeeze %99 : memref<1x!tpu.dma_semaphore, #tpu.memory_space<semaphore_mem>> -> memref<!tpu.dma_semaphore, #tpu.memory_space<semaphore_mem>>
      tpu.wait_dma2 semaphore(%100 : memref<!tpu.dma_semaphore, #tpu.memory_space<semaphore_mem>>) src(%97 : memref<1x32xi32, #tpu.memory_space<any>>) dst(%98 : memref<1x32xi32, #tpu.memory_space<vmem>>)
      %c0_i32_83 = arith.constant 0 : i32
      %101 = tpu.memref_slice %arg2[%95, %c0_i32_83] : memref<16x32xi32, #tpu.memory_space<any>> -> memref<1x32xi32, #tpu.memory_space<any>>
      %c0_i32_84 = arith.constant 0 : i32
      %102 = tpu.memref_slice %arg3[%91, %c0_i32_84] : memref<8x32xi32, #tpu.memory_space<vmem>> -> memref<1x32xi32, #tpu.memory_space<vmem>>
      %103 = tpu.memref_slice %arg4[%92] : memref<8x!tpu.dma_semaphore, #tpu.memory_space<semaphore_mem>> -> memref<1x!tpu.dma_semaphore, #tpu.memory_space<semaphore_mem>>
      %104 = tpu.memref_squeeze %103 : memref<1x!tpu.dma_semaphore, #tpu.memory_space<semaphore_mem>> -> memref<!tpu.dma_semaphore, #tpu.memory_space<semaphore_mem>>
      tpu.enqueue_dma source(%101 : memref<1x32xi32, #tpu.memory_space<any>>) target(%102 : memref<1x32xi32, #tpu.memory_space<vmem>>) target_semaphore(%104 : memref<!tpu.dma_semaphore, #tpu.memory_space<semaphore_mem>>)
    }
    %c0_i32_35 = arith.constant 0 : i32
    %c0_i32_36 = arith.constant 0 : i32
    %c0_i32_37 = arith.constant 0 : i32
    %c0_i32_38 = arith.constant 0 : i32
    %58 = tpu.memref_slice %arg2[%c0_i32_37, %c0_i32_38] : memref<16x32xi32, #tpu.memory_space<any>> -> memref<1x32xi32, #tpu.memory_space<any>>
    %c0_i32_39 = arith.constant 0 : i32
    %c0_i32_40 = arith.constant 0 : i32
    %59 = tpu.memref_slice %arg3[%c0_i32_39, %c0_i32_40] : memref<8x32xi32, #tpu.memory_space<vmem>> -> memref<1x32xi32, #tpu.memory_space<vmem>>
    %60 = tpu.memref_slice %arg4[%c0_i32_36] : memref<8x!tpu.dma_semaphore, #tpu.memory_space<semaphore_mem>> -> memref<1x!tpu.dma_semaphore, #tpu.memory_space<semaphore_mem>>
    %61 = tpu.memref_squeeze %60 : memref<1x!tpu.dma_semaphore, #tpu.memory_space<semaphore_mem>> -> memref<!tpu.dma_semaphore, #tpu.memory_space<semaphore_mem>>
    tpu.wait_dma2 semaphore(%61 : memref<!tpu.dma_semaphore, #tpu.memory_space<semaphore_mem>>) src(%58 : memref<1x32xi32, #tpu.memory_space<any>>) dst(%59 : memref<1x32xi32, #tpu.memory_space<vmem>>)
    %c1_i32_41 = arith.constant 1 : i32
    %c0_i32_42 = arith.constant 0 : i32
    %c0_i32_43 = arith.constant 0 : i32
    %62 = tpu.memref_slice %arg2[%c0_i32_42, %c0_i32_43] : memref<16x32xi32, #tpu.memory_space<any>> -> memref<1x32xi32, #tpu.memory_space<any>>
    %c1_i32_44 = arith.constant 1 : i32
    %c0_i32_45 = arith.constant 0 : i32
    %63 = tpu.memref_slice %arg3[%c1_i32_44, %c0_i32_45] : memref<8x32xi32, #tpu.memory_space<vmem>> -> memref<1x32xi32, #tpu.memory_space<vmem>>
    %64 = tpu.memref_slice %arg4[%c1_i32_41] : memref<8x!tpu.dma_semaphore, #tpu.memory_space<semaphore_mem>> -> memref<1x!tpu.dma_semaphore, #tpu.memory_space<semaphore_mem>>
    %65 = tpu.memref_squeeze %64 : memref<1x!tpu.dma_semaphore, #tpu.memory_space<semaphore_mem>> -> memref<!tpu.dma_semaphore, #tpu.memory_space<semaphore_mem>>
    tpu.wait_dma2 semaphore(%65 : memref<!tpu.dma_semaphore, #tpu.memory_space<semaphore_mem>>) src(%62 : memref<1x32xi32, #tpu.memory_space<any>>) dst(%63 : memref<1x32xi32, #tpu.memory_space<vmem>>)
    %c2_i32_46 = arith.constant 2 : i32
    %c0_i32_47 = arith.constant 0 : i32
    %c0_i32_48 = arith.constant 0 : i32
    %66 = tpu.memref_slice %arg2[%c0_i32_47, %c0_i32_48] : memref<16x32xi32, #tpu.memory_space<any>> -> memref<1x32xi32, #tpu.memory_space<any>>
    %c2_i32_49 = arith.constant 2 : i32
    %c0_i32_50 = arith.constant 0 : i32
    %67 = tpu.memref_slice %arg3[%c2_i32_49, %c0_i32_50] : memref<8x32xi32, #tpu.memory_space<vmem>> -> memref<1x32xi32, #tpu.memory_space<vmem>>
    %68 = tpu.memref_slice %arg4[%c2_i32_46] : memref<8x!tpu.dma_semaphore, #tpu.memory_space<semaphore_mem>> -> memref<1x!tpu.dma_semaphore, #tpu.memory_space<semaphore_mem>>
    %69 = tpu.memref_squeeze %68 : memref<1x!tpu.dma_semaphore, #tpu.memory_space<semaphore_mem>> -> memref<!tpu.dma_semaphore, #tpu.memory_space<semaphore_mem>>
    tpu.wait_dma2 semaphore(%69 : memref<!tpu.dma_semaphore, #tpu.memory_space<semaphore_mem>>) src(%66 : memref<1x32xi32, #tpu.memory_space<any>>) dst(%67 : memref<1x32xi32, #tpu.memory_space<vmem>>)
    %c3_i32_51 = arith.constant 3 : i32
    %c0_i32_52 = arith.constant 0 : i32
    %c0_i32_53 = arith.constant 0 : i32
    %70 = tpu.memref_slice %arg2[%c0_i32_52, %c0_i32_53] : memref<16x32xi32, #tpu.memory_space<any>> -> memref<1x32xi32, #tpu.memory_space<any>>
    %c3_i32_54 = arith.constant 3 : i32
    %c0_i32_55 = arith.constant 0 : i32
    %71 = tpu.memref_slice %arg3[%c3_i32_54, %c0_i32_55] : memref<8x32xi32, #tpu.memory_space<vmem>> -> memref<1x32xi32, #tpu.memory_space<vmem>>
    %72 = tpu.memref_slice %arg4[%c3_i32_51] : memref<8x!tpu.dma_semaphore, #tpu.memory_space<semaphore_mem>> -> memref<1x!tpu.dma_semaphore, #tpu.memory_space<semaphore_mem>>
    %73 = tpu.memref_squeeze %72 : memref<1x!tpu.dma_semaphore, #tpu.memory_space<semaphore_mem>> -> memref<!tpu.dma_semaphore, #tpu.memory_space<semaphore_mem>>
    tpu.wait_dma2 semaphore(%73 : memref<!tpu.dma_semaphore, #tpu.memory_space<semaphore_mem>>) src(%70 : memref<1x32xi32, #tpu.memory_space<any>>) dst(%71 : memref<1x32xi32, #tpu.memory_space<vmem>>)
    %c4_i32_56 = arith.constant 4 : i32
    %c0_i32_57 = arith.constant 0 : i32
    %c0_i32_58 = arith.constant 0 : i32
    %74 = tpu.memref_slice %arg2[%c0_i32_57, %c0_i32_58] : memref<16x32xi32, #tpu.memory_space<any>> -> memref<1x32xi32, #tpu.memory_space<any>>
    %c4_i32_59 = arith.constant 4 : i32
    %c0_i32_60 = arith.constant 0 : i32
    %75 = tpu.memref_slice %arg3[%c4_i32_59, %c0_i32_60] : memref<8x32xi32, #tpu.memory_space<vmem>> -> memref<1x32xi32, #tpu.memory_space<vmem>>
    %76 = tpu.memref_slice %arg4[%c4_i32_56] : memref<8x!tpu.dma_semaphore, #tpu.memory_space<semaphore_mem>> -> memref<1x!tpu.dma_semaphore, #tpu.memory_space<semaphore_mem>>
    %77 = tpu.memref_squeeze %76 : memref<1x!tpu.dma_semaphore, #tpu.memory_space<semaphore_mem>> -> memref<!tpu.dma_semaphore, #tpu.memory_space<semaphore_mem>>
    tpu.wait_dma2 semaphore(%77 : memref<!tpu.dma_semaphore, #tpu.memory_space<semaphore_mem>>) src(%74 : memref<1x32xi32, #tpu.memory_space<any>>) dst(%75 : memref<1x32xi32, #tpu.memory_space<vmem>>)
    %c5_i32_61 = arith.constant 5 : i32
    %c0_i32_62 = arith.constant 0 : i32
    %c0_i32_63 = arith.constant 0 : i32
    %78 = tpu.memref_slice %arg2[%c0_i32_62, %c0_i32_63] : memref<16x32xi32, #tpu.memory_space<any>> -> memref<1x32xi32, #tpu.memory_space<any>>
    %c5_i32_64 = arith.constant 5 : i32
    %c0_i32_65 = arith.constant 0 : i32
    %79 = tpu.memref_slice %arg3[%c5_i32_64, %c0_i32_65] : memref<8x32xi32, #tpu.memory_space<vmem>> -> memref<1x32xi32, #tpu.memory_space<vmem>>
    %80 = tpu.memref_slice %arg4[%c5_i32_61] : memref<8x!tpu.dma_semaphore, #tpu.memory_space<semaphore_mem>> -> memref<1x!tpu.dma_semaphore, #tpu.memory_space<semaphore_mem>>
    %81 = tpu.memref_squeeze %80 : memref<1x!tpu.dma_semaphore, #tpu.memory_space<semaphore_mem>> -> memref<!tpu.dma_semaphore, #tpu.memory_space<semaphore_mem>>
    tpu.wait_dma2 semaphore(%81 : memref<!tpu.dma_semaphore, #tpu.memory_space<semaphore_mem>>) src(%78 : memref<1x32xi32, #tpu.memory_space<any>>) dst(%79 : memref<1x32xi32, #tpu.memory_space<vmem>>)
    %c6_i32_66 = arith.constant 6 : i32
    %c0_i32_67 = arith.constant 0 : i32
    %c0_i32_68 = arith.constant 0 : i32
    %82 = tpu.memref_slice %arg2[%c0_i32_67, %c0_i32_68] : memref<16x32xi32, #tpu.memory_space<any>> -> memref<1x32xi32, #tpu.memory_space<any>>
    %c6_i32_69 = arith.constant 6 : i32
    %c0_i32_70 = arith.constant 0 : i32
    %83 = tpu.memref_slice %arg3[%c6_i32_69, %c0_i32_70] : memref<8x32xi32, #tpu.memory_space<vmem>> -> memref<1x32xi32, #tpu.memory_space<vmem>>
    %84 = tpu.memref_slice %arg4[%c6_i32_66] : memref<8x!tpu.dma_semaphore, #tpu.memory_space<semaphore_mem>> -> memref<1x!tpu.dma_semaphore, #tpu.memory_space<semaphore_mem>>
    %85 = tpu.memref_squeeze %84 : memref<1x!tpu.dma_semaphore, #tpu.memory_space<semaphore_mem>> -> memref<!tpu.dma_semaphore, #tpu.memory_space<semaphore_mem>>
    tpu.wait_dma2 semaphore(%85 : memref<!tpu.dma_semaphore, #tpu.memory_space<semaphore_mem>>) src(%82 : memref<1x32xi32, #tpu.memory_space<any>>) dst(%83 : memref<1x32xi32, #tpu.memory_space<vmem>>)
    %c7_i32_71 = arith.constant 7 : i32
    %c0_i32_72 = arith.constant 0 : i32
    %c0_i32_73 = arith.constant 0 : i32
    %86 = tpu.memref_slice %arg2[%c0_i32_72, %c0_i32_73] : memref<16x32xi32, #tpu.memory_space<any>> -> memref<1x32xi32, #tpu.memory_space<any>>
    %c7_i32_74 = arith.constant 7 : i32
    %c0_i32_75 = arith.constant 0 : i32
    %87 = tpu.memref_slice %arg3[%c7_i32_74, %c0_i32_75] : memref<8x32xi32, #tpu.memory_space<vmem>> -> memref<1x32xi32, #tpu.memory_space<vmem>>
    %88 = tpu.memref_slice %arg4[%c7_i32_71] : memref<8x!tpu.dma_semaphore, #tpu.memory_space<semaphore_mem>> -> memref<1x!tpu.dma_semaphore, #tpu.memory_space<semaphore_mem>>
    %89 = tpu.memref_squeeze %88 : memref<1x!tpu.dma_semaphore, #tpu.memory_space<semaphore_mem>> -> memref<!tpu.dma_semaphore, #tpu.memory_space<semaphore_mem>>
    tpu.wait_dma2 semaphore(%89 : memref<!tpu.dma_semaphore, #tpu.memory_space<semaphore_mem>>) src(%86 : memref<1x32xi32, #tpu.memory_space<any>>) dst(%87 : memref<1x32xi32, #tpu.memory_space<vmem>>)
    return
  }
  func.func @transform_1(%arg0: i32, %arg1: memref<16xi32, #tpu.memory_space<smem>>) -> (i32, i32) {
    %c0_i32 = arith.constant 0 : i32
    %c0_i32_0 = arith.constant 0 : i32
    return %arg0, %c0_i32 : i32, i32
  }
}

</mosaic_0001>

<llo_original>
// kernel: tpu_custom_call.1
$region0: #{tpu_custom_call.1}
  #allocation0 [shape = 'u32[]', space=smem, size = 0x4, offset = 0x4, fixed_abs, tag = 'smem constant byte address 0x4 - core index']
  #allocation1 [shape = 'u32[144,128]{1,0:T(1,128)}', space=vmem, size = 0x12000, scoped, tag = 'internal scratch']
  #allocation2 [shape = 's32[8]{0}', space=sflag, size = 0x20, scoped, tag = 'scratch operand']
  #allocation3 [shape = 's32[1]{0}', space=sflag, size = 0x4, scoped, tag = 'scoped memory for tpu_custom_call.1']
  #allocation4 [shape = 'u8[512]{0}', space=smem, size = 0x200, scoped, tag = 'prefetched SMEM operand 0']
  #allocation7 [shape = 's32[]', space=sflag, size = 0x4, offset = 0, fixed_abs, tag = 'sflag constant byte address 0x0 - dummy sync flag']
  #allocation8 [shape = 's32[]', space=sflag, size = 0x4, offset = 0, fixed_abs, tag = 'sflag constant byte address 0x0 - dummy sync flag']
  #allocation9 [shape = 'u32[]', space=smem, size = 0x4, offset = 0x44, fixed_abs, tag = 'smem constant byte address 0x44 - assertion arg 0']
  #allocation10 [shape = 'u32[]', space=smem, size = 0x4, offset = 0x48, fixed_abs, tag = 'smem constant byte address 0x48 - assertion arg 1']
  #allocation11 [shape = 's32[]', space=sflag, size = 0x4, offset = 0, fixed_abs, tag = 'sflag constant byte address 0x0 - dummy sync flag']
  #allocation12 [shape = 's32[]', space=sflag, size = 0x4, offset = 0, fixed_abs, tag = 'sflag constant byte address 0x0 - dummy sync flag']
  #allocation13 [shape = 's32[]', space=sflag, size = 0x4, offset = 0, fixed_abs, tag = 'sflag constant byte address 0x0 - dummy sync flag']
  #allocation14 [shape = 's32[]', space=sflag, size = 0x4, offset = 0, fixed_abs, tag = 'sflag constant byte address 0x0 - dummy sync flag']
  #allocation15 [shape = 's32[]', space=sflag, size = 0x4, offset = 0, fixed_abs, tag = 'sflag constant byte address 0x0 - dummy sync flag']
  #allocation16 [shape = 's32[]', space=sflag, size = 0x4, offset = 0, fixed_abs, tag = 'sflag constant byte address 0x0 - dummy sync flag']
  #allocation17 [shape = 's32[]', space=sflag, size = 0x4, offset = 0, fixed_abs, tag = 'sflag constant byte address 0x0 - dummy sync flag']
  #allocation18 [shape = 's32[]', space=sflag, size = 0x4, offset = 0, fixed_abs, tag = 'sflag constant byte address 0x0 - dummy sync flag']
  #allocation19 [shape = 's32[]', space=sflag, size = 0x4, offset = 0, fixed_abs, tag = 'sflag constant byte address 0x0 - dummy sync flag']
  #allocation20 [shape = 's32[]', space=sflag, size = 0x4, offset = 0, fixed_abs, tag = 'sflag constant byte address 0x0 - dummy sync flag']
  #allocation21 [shape = 's32[]', space=sflag, size = 0x4, offset = 0, fixed_abs, tag = 'sflag constant byte address 0x0 - dummy sync flag']
  #allocation22 [shape = 's32[]', space=sflag, size = 0x4, offset = 0, fixed_abs, tag = 'sflag constant byte address 0x0 - dummy sync flag']
  #allocation23 [shape = 's32[]', space=sflag, size = 0x4, offset = 0, fixed_abs, tag = 'sflag constant byte address 0x0 - dummy sync flag']
  #allocation24 [shape = 's32[]', space=sflag, size = 0x4, offset = 0, fixed_abs, tag = 'sflag constant byte address 0x0 - dummy sync flag']
  %s0 = inlined_call_operand.hbm [shape: s32[16], index: 0, kind: input, shape index: {}]
  %s1 = inlined_call_operand.hbm [shape: u32[16,32], index: 1, kind: input, shape index: {}]
  %s2 = inlined_call_operand.hbm [shape: u32[16,32], index: 2, kind: output, shape index: {}]
  %s3 = sld [smem:[#allocation0]]
  $region57: #{tpu_custom_call.1} parent=0
    _
  %s5 = ssub.s32 1, %s3
  %s6 = scalar_select 0, %s5, %s3
  %8 = dma.hbm_to_smem %s0, 16, [#allocation4], [#allocation3]
  %9 = dma.done [#allocation3], 16
  %10 = sfence
  $region1: #{tpu_custom_call.1} parent=0
    #allocation5 [shape = 'u8[8192]{0}', space=vmem, size = 0x2000, scoped, tag = 'output window, operand 0']
    #allocation6 [shape = 's32[2]{0}', space=sflag, size = 0x8, scoped, tag = 'scoped memory for tpu_custom_call.1']
    %11 = vsyncpa [#allocation6], 0
    %s12 = scalar_lea.sflag [#allocation6], 1
    %13 = vsyncpa %s12, 0
    loop: start=0, step=1, limit=3
    $region2: #{tpu_custom_call.1} parent=1 // loop_pre_header
      _
    $region3: #{tpu_custom_call.1} parent=1 // loop_header
      %s15 = sphi 0, %s19
      %p16 = scmp.ge.s32.totalorder %s15, 3
      %s24 = sphi 0, %s26
      %s27 = sphi 0, %s24
      %s37 = sphi 0, %s27
    $region4: #{tpu_custom_call.1} parent=1 // loop_header_branch
      %18 = sbr.rel (%p16) target = $region8
    $region5: #{tpu_custom_call.1} parent=1 // loop_body
      %s20 = ssub.s32 %s15, 1
      %s21 = sadd.s32 %s15, 1
      %s22 = ssub.s32 %s15, %s21
      %p23 = scmp.eq.s32.totalorder %s22, 0
      %s25 = sadd.s32 %s24, 1
      %s26 = scalar_select %p23, %s24, %s25
      %p28 = pneg %p23
      %p29 = scmp.eq.s32.totalorder %s15, 1
      %p30 = por %p28, %p29
      %p31 = scmp.ne.s32.totalorder %s24, %s27
      %p32 = scmp.eq.s32.totalorder %s15, 0
      %p33 = por %p31, %p32
      %p34 = scmp.ne.s32.totalorder %s24, %s27
      %p35 = scmp.eq.s32.totalorder %s20, 1
      %p36 = por %p34, %p35
      %p38 = scmp.ne.s32.totalorder %s27, %s37
      %p39 = scmp.eq.s32.totalorder %s20, 0
      %p40 = por %p38, %p39
      %p41 = scmp.lt.s32.totalorder %s15, 2
      // Predicated region
      $region9: #{tpu_custom_call.1} parent=5 // pred_check
        %p42 = pneg %p41
      $region10: #{tpu_custom_call.1} parent=5 // pred_check_branch
        %44 = sbr.rel (%p42) target = $region12
      $region11: #{tpu_custom_call.1} parent=5 // pred_region
        %p45 = pneg %p33
        %p46 = pneg %p30
        %s47 = sand.u32 %s24, 1
        %s48 = scalar_lea.sflag [#allocation6], %s47
        %s49 = sand.u32 %s24, 1
        %s50 = smul.addr %s49, 8
        %s51 = scalar_lea.vmem [#allocation5], %s50
        %s52 = smul.u32 %s15, 8
        %s53 = sld [smem:[#allocation4 + %s52]]
        %s54 = smul.addr %s53, 16
        %s55 = scalar_lea.hbm %s1, %s54
        // Predicated region
        $region13: #{tpu_custom_call.1} parent=11 // pred_check
          _
        $region14: #{tpu_custom_call.1} parent=11 // pred_check_branch
          %57 = sbr.rel target = $region16
        $region15: #{tpu_custom_call.1} parent=11 // pred_region
          %58 = sst [smem:[#allocation9]] [#allocation8]
          %59 = sst [smem:[#allocation10]] [#allocation7]
        $region16: #{tpu_custom_call.1} parent=11 // pred_fallthru
          _
        %61 = shalt.err (0)
        %s63 = sshll.u32 %s51, 4
        %s64 = int_to_ptr.vmem [resolvable:$true] %s63
        %66 = dma.hbm_to_vmem [thread:$0]  %s55, 16, %s64, [#allocation2]
        %s67 = sadd.s32 %s52, 1
        %s68 = sld [smem:[#allocation4 + %s67]]
        %s69 = smul.addr %s68, 16
        %s70 = scalar_lea.hbm %s1, %s69
        %s71 = scalar_lea.vmem %s51, 1 [#allocation5]
        %s72 = scalar_lea.sflag [#allocation2], 1
        // Predicated region
        $region17: #{tpu_custom_call.1} parent=11 // pred_check
          _
        $region18: #{tpu_custom_call.1} parent=11 // pred_check_branch
          %74 = sbr.rel target = $region20
        $region19: #{tpu_custom_call.1} parent=11 // pred_region
          %75 = sst [smem:[#allocation9]] [#allocation12]
          %76 = sst [smem:[#allocation10]] [#allocation11]
        $region20: #{tpu_custom_call.1} parent=11 // pred_fallthru
          _
        %78 = shalt.err (0)
        %s80 = sshll.u32 %s71, 4
        %s81 = int_to_ptr.vmem [resolvable:$true] %s80
        %83 = dma.hbm_to_vmem [thread:$0]  %s70, 16, %s81, %s72
        %s84 = sadd.s32 %s52, 2
        %s85 = sld [smem:[#allocation4 + %s84]]
        %s86 = smul.addr %s85, 16
        %s87 = scalar_lea.hbm %s1, %s86
        %s88 = scalar_lea.vmem %s51, 2 [#allocation5]
        %s89 = scalar_lea.sflag [#allocation2], 2
        // Predicated region
        $region21: #{tpu_custom_call.1} parent=11 // pred_check
          _
        $region22: #{tpu_custom_call.1} parent=11 // pred_check_branch
          %91 = sbr.rel target = $region24
        $region23: #{tpu_custom_call.1} parent=11 // pred_region
          %92 = sst [smem:[#allocation9]] [#allocation14]
          %93 = sst [smem:[#allocation10]] [#allocation13]
        $region24: #{tpu_custom_call.1} parent=11 // pred_fallthru
          _
        %95 = shalt.err (0)
        %s97 = sshll.u32 %s88, 4
        %s98 = int_to_ptr.vmem [resolvable:$true] %s97
        %100 = dma.hbm_to_vmem [thread:$0]  %s87, 16, %s98, %s89
        %s101 = sadd.s32 %s52, 3
        %s102 = sld [smem:[#allocation4 + %s101]]
        %s103 = smul.addr %s102, 16
        %s104 = scalar_lea.hbm %s1, %s103
        %s105 = scalar_lea.vmem %s51, 3 [#allocation5]
        %s106 = scalar_lea.sflag [#allocation2], 3
        // Predicated region
        $region25: #{tpu_custom_call.1} parent=11 // pred_check
          _
        $region26: #{tpu_custom_call.1} parent=11 // pred_check_branch
          %108 = sbr.rel target = $region28
        $region27: #{tpu_custom_call.1} parent=11 // pred_region
          %109 = sst [smem:[#allocation9]] [#allocation16]
          %110 = sst [smem:[#allocation10]] [#allocation15]
        $region28: #{tpu_custom_call.1} parent=11 // pred_fallthru
          _
        %112 = shalt.err (0)
        %s114 = sshll.u32 %s105, 4
        %s115 = int_to_ptr.vmem [resolvable:$true] %s114
        %117 = dma.hbm_to_vmem [thread:$0]  %s104, 16, %s115, %s106
        %s118 = sadd.s32 %s52, 4
        %s119 = sld [smem:[#allocation4 + %s118]]
        %s120 = smul.addr %s119, 16
        %s121 = scalar_lea.hbm %s1, %s120
        %s122 = scalar_lea.vmem %s51, 4 [#allocation5]
        %s123 = scalar_lea.sflag [#allocation2], 4
        // Predicated region
        $region29: #{tpu_custom_call.1} parent=11 // pred_check
          _
        $region30: #{tpu_custom_call.1} parent=11 // pred_check_branch
          %125 = sbr.rel target = $region32
        $region31: #{tpu_custom_call.1} parent=11 // pred_region
          %126 = sst [smem:[#allocation9]] [#allocation18]
          %127 = sst [smem:[#allocation10]] [#allocation17]
        $region32: #{tpu_custom_call.1} parent=11 // pred_fallthru
          _
        %129 = shalt.err (0)
        %s131 = sshll.u32 %s122, 4
        %s132 = int_to_ptr.vmem [resolvable:$true] %s131
        %134 = dma.hbm_to_vmem [thread:$0]  %s121, 16, %s132, %s123
        %s135 = sadd.s32 %s52, 5
        %s136 = sld [smem:[#allocation4 + %s135]]
        %s137 = smul.addr %s136, 16
        %s138 = scalar_lea.hbm %s1, %s137
        %s139 = scalar_lea.vmem %s51, 5 [#allocation5]
        %s140 = scalar_lea.sflag [#allocation2], 5
        // Predicated region
        $region33: #{tpu_custom_call.1} parent=11 // pred_check
          _
        $region34: #{tpu_custom_call.1} parent=11 // pred_check_branch
          %142 = sbr.rel target = $region36
        $region35: #{tpu_custom_call.1} parent=11 // pred_region
          %143 = sst [smem:[#allocation9]] [#allocation20]
          %144 = sst [smem:[#allocation10]] [#allocation19]
        $region36: #{tpu_custom_call.1} parent=11 // pred_fallthru
          _
        %146 = shalt.err (0)
        %s148 = sshll.u32 %s139, 4
        %s149 = int_to_ptr.vmem [resolvable:$true] %s148
        %151 = dma.hbm_to_vmem [thread:$0]  %s138, 16, %s149, %s140
        %s152 = sadd.s32 %s52, 6
        %s153 = sld [smem:[#allocation4 + %s152]]
        %s154 = smul.addr %s153, 16
        %s155 = scalar_lea.hbm %s1, %s154
        %s156 = scalar_lea.vmem %s51, 6 [#allocation5]
        %s157 = scalar_lea.sflag [#allocation2], 6
        // Predicated region
        $region37: #{tpu_custom_call.1} parent=11 // pred_check
          _
        $region38: #{tpu_custom_call.1} parent=11 // pred_check_branch
          %159 = sbr.rel target = $region40
        $region39: #{tpu_custom_call.1} parent=11 // pred_region
          %160 = sst [smem:[#allocation9]] [#allocation22]
          %161 = sst [smem:[#allocation10]] [#allocation21]
        $region40: #{tpu_custom_call.1} parent=11 // pred_fallthru
          _
        %163 = shalt.err (0)
        %s165 = sshll.u32 %s156, 4
        %s166 = int_to_ptr.vmem [resolvable:$true] %s165
        %168 = dma.hbm_to_vmem [thread:$0]  %s155, 16, %s166, %s157
        %s169 = sadd.s32 %s52, 7
        %s170 = sld [smem:[#allocation4 + %s169]]
        %s171 = smul.addr %s170, 16
        %s172 = scalar_lea.hbm %s1, %s171
        %s173 = scalar_lea.vmem %s51, 7 [#allocation5]
        %s174 = scalar_lea.sflag [#allocation2], 7
        // Predicated region
        $region41: #{tpu_custom_call.1} parent=11 // pred_check
          _
        $region42: #{tpu_custom_call.1} parent=11 // pred_check_branch
          %176 = sbr.rel target = $region44
        $region43: #{tpu_custom_call.1} parent=11 // pred_region
          %177 = sst [smem:[#allocation9]] [#allocation24]
          %178 = sst [smem:[#allocation10]] [#allocation23]
        $region44: #{tpu_custom_call.1} parent=11 // pred_fallthru
          _
        %180 = shalt.err (0)
        %s182 = sshll.u32 %s173, 4
        %s183 = int_to_ptr.vmem [resolvable:$true] %s182
        %185 = dma.hbm_to_vmem [thread:$0]  %s172, 16, %s183, %s174
        %s186 = smul.u32 1, 1
        %s187 = sshll.u32 %s186, 4
        %188 = dma.done [#allocation2], %s187
        %s189 = sshll.u32 %s186, 4
        %190 = dma.done %s72, %s189
        %s191 = sshll.u32 %s186, 4
        %192 = dma.done %s89, %s191
        %s193 = sshll.u32 %s186, 4
        %194 = dma.done %s106, %s193
        %s195 = sshll.u32 %s186, 4
        %196 = dma.done %s123, %s195
        %s197 = sshll.u32 %s186, 4
        %198 = dma.done %s140, %s197
        %s199 = sshll.u32 %s186, 4
        %200 = dma.done %s157, %s199
        %s201 = sshll.u32 %s186, 4
        %202 = dma.done %s174, %s201
        %s203 = sand.u32 %s24, 1
        %s204 = scalar_lea.sflag [#allocation6], %s203
        %s205 = sand.u32 %s24, 1
        %s206 = smul.addr %s205, 8
        %s207 = scalar_lea.vmem [#allocation5], %s206
        // Predicated region
        $region45: #{tpu_custom_call.1} parent=11 // pred_check
          %p208 = pneg %p30
        $region46: #{tpu_custom_call.1} parent=11 // pred_check_branch
          %210 = sbr.rel (%p208) target = $region48
        $region47: #{tpu_custom_call.1} parent=11 // pred_region
          %s212 = ssub.s32 128, 128
          %213 = vsyncadd %s204, %s212
          %s214 = smul.addr %s15, 128
          %s215 = scalar_lea.hbm %s2, %s214
          %s217 = sshll.u32 %s207, 4
          %s218 = int_to_ptr.vmem [resolvable:$true] %s217
          %220 = dma.vmem_to_hbm [thread:$0]  %s218, 128, %s215, %s204
        $region48: #{tpu_custom_call.1} parent=11 // pred_fallthru
          _
      $region12: #{tpu_custom_call.1} parent=5 // pred_fallthru
        _
      %p221 = scmp.le.s32.totalorder 1, %s15
      // Predicated region
      $region49: #{tpu_custom_call.1} parent=5 // pred_check
        %p222 = pneg %p221
      $region50: #{tpu_custom_call.1} parent=5 // pred_check_branch
        %224 = sbr.rel (%p222) target = $region52
      $region51: #{tpu_custom_call.1} parent=5 // pred_region
        %s225 = ssub.s32 %s15, 1
        // Predicated region
        $region53: #{tpu_custom_call.1} parent=51 // pred_check
          %p226 = pneg %p36
        $region54: #{tpu_custom_call.1} parent=51 // pred_check_branch
          %228 = sbr.rel (%p226) target = $region56
        $region55: #{tpu_custom_call.1} parent=51 // pred_region
          %s229 = sand.u32 %s27, 1
          %s230 = scalar_lea.sflag [#allocation6], %s229
          %s231 = sand.u32 %s27, 1
          %s232 = smul.addr %s231, 8
          %s233 = scalar_lea.vmem [#allocation5], %s232
          %234 = dma.done %s230, 128
        $region56: #{tpu_custom_call.1} parent=51 // pred_fallthru
          _
      $region52: #{tpu_custom_call.1} parent=5 // pred_fallthru
        _
    $region6: #{tpu_custom_call.1} parent=1 // loop_footer
      %s19 = sadd.s32 1, %s15
    $region7: #{tpu_custom_call.1} parent=1 // loop_footer_branch
      %14 = sbr.rel target = $region3
    $region8: #{tpu_custom_call.1} parent=1 // loop_exit
      _
    %235 = vsyncpa [#allocation6], 1
    %s236 = scalar_lea.sflag [#allocation6], 1
    %237 = vsyncpa %s236, 1
  %238 = vsyncmov [#allocation2]
  %s239 = vpop.sfrf %238
  %p240 = scmp.eq.s32.totalorder %s239, 0
  %p241 = pneg %p240
  %243 = shalt.err (%p241)
  %s244 = scalar_lea.sflag [#allocation2], 1
  %245 = vsyncmov %s244
  %s246 = vpop.sfrf %245
  %p247 = scmp.eq.s32.totalorder %s246, 0
  %p248 = pneg %p247
  %250 = shalt.err (%p248)
  %s251 = scalar_lea.sflag [#allocation2], 2
  %252 = vsyncmov %s251
  %s253 = vpop.sfrf %252
  %p254 = scmp.eq.s32.totalorder %s253, 0
  %p255 = pneg %p254
  %257 = shalt.err (%p255)
  %s258 = scalar_lea.sflag [#allocation2], 3
  %259 = vsyncmov %s258
  %s260 = vpop.sfrf %259
  %p261 = scmp.eq.s32.totalorder %s260, 0
  %p262 = pneg %p261
  %264 = shalt.err (%p262)
  %s265 = scalar_lea.sflag [#allocation2], 4
  %266 = vsyncmov %s265
  %s267 = vpop.sfrf %266
  %p268 = scmp.eq.s32.totalorder %s267, 0
  %p269 = pneg %p268
  %271 = shalt.err (%p269)
  %s272 = scalar_lea.sflag [#allocation2], 5
  %273 = vsyncmov %s272
  %s274 = vpop.sfrf %273
  %p275 = scmp.eq.s32.totalorder %s274, 0
  %p276 = pneg %p275
  %278 = shalt.err (%p276)
  %s279 = scalar_lea.sflag [#allocation2], 6
  %280 = vsyncmov %s279
  %s281 = vpop.sfrf %280
  %p282 = scmp.eq.s32.totalorder %s281, 0
  %p283 = pneg %p282
  %285 = shalt.err (%p283)
  %s286 = scalar_lea.sflag [#allocation2], 7
  %287 = vsyncmov %s286
  %s288 = vpop.sfrf %287
  %p289 = scmp.eq.s32.totalorder %s288, 0
  %p290 = pneg %p289
  %292 = shalt.err (%p290)

</llo_original>
